<compile_context>
chip_gen: v6e
topology: v6e:2x2x1
jax: 0.10.0
libtpu: 0.0.40
codegen_flags: <defaults>
</compile_context>

<pallas_src>
import jax
import jax.numpy as jnp
from jax.experimental import pallas as pl
from jax.experimental.pallas import tpu as pltpu

# "hparams" — synthetic, deterministic, defined in-script.
N_MELS = 32
N_FREQ = 128
N_PRIORITY_FREQ = 64   # hp.n_priority_freq


def _round_up(x, m):
    return ((x + m - 1) // m) * m


def _device_kind():
    try:
        return jax.devices()[0].device_kind.lower()
    except Exception:
        return ""


def _vmem_budget_bytes(kind):
    # Budget for the double-buffered *input* tiles only; outputs/scratch get
    # extra slack in vmem_limit_bytes below.  Leaves headroom under each
    # generation's physical VMEM.
    if "v6" in kind or "trillium" in kind:
        return 64 * 1024 * 1024        # 128 MiB physical
    if "v7" in kind:
        return 32 * 1024 * 1024        # 64 MiB physical per TensorCore
    return 16 * 1024 * 1024            # v5e / unknown (incl. AOT-on-CPU tracing)


def _make_partial_kernel(n_rows, tile_rows):
    """Per-tile, per-lane partial sums of |a - b| for the mel and mag paths.

    `n_rows` / `tile_rows` are static Python ints; the ragged-tail mask is
    only generated when the rows don't divide the tile.
    """
    need_mask = (n_rows % tile_rows) != 0

    def kernel(mel_ref, mel_hat_ref, mag_ref, mag_hat_ref,
               mel_out_ref, mag_out_ref):
        mel_d = jnp.abs(mel_ref[...].astype(jnp.float32)
                        - mel_hat_ref[...].astype(jnp.float32))
        mag_d = jnp.abs(mag_ref[...].astype(jnp.float32)
                        - mag_hat_ref[...].astype(jnp.float32))

        if need_mask:
            # Zero rows past the true row count (last partial tile holds
            # undefined VMEM data there).  Non-last tiles see rows_left >=
            # tile_rows, so the select is a no-op for them (VPU has slack).
            i = pl.program_id(0)
            rows_left = n_rows - i * tile_rows
            row_ids = jax.lax.broadcasted_iota(jnp.int32, (tile_rows, 1), 0)
            valid = row_ids < rows_left
            mel_d = jnp.where(valid, mel_d, 0.0)
            mag_d = jnp.where(valid, mag_d, 0.0)

        # Reduce over rows only -> one lane-vector per tile; no reshape.
        mel_out_ref[0] = jnp.sum(mel_d, axis=0, keepdims=True)
        mag_out_ref[0] = jnp.sum(mag_d, axis=0, keepdims=True)

    return kernel


def tacotron_loss(mels, mels_hat, mags, mags_hat,
                  n_priority_freq=N_PRIORITY_FREQ):
    """Returns (mel_loss, mag_loss) as f32 scalars (matches the PyTorch module)."""
    B, T, n_mels = mels.shape
    _, _, n_freq = mags.shape
    n_rows = B * T

    # Views only — no padding, no extra HBM copies.
    mels2 = mels.reshape(n_rows, n_mels)
    mels_hat2 = mels_hat.reshape(n_rows, n_mels)
    mags2 = mags.reshape(n_rows, n_freq)
    mags_hat2 = mags_hat.reshape(n_rows, n_freq)

    kind = _device_kind()
    itemsize = jnp.dtype(mels.dtype).itemsize
    lanes_mel = _round_up(n_mels, 128)     # Mosaic's internal VMEM lane padding
    lanes_mag = _round_up(n_freq, 128)
    # 2 arrays per path x 2 pipeline buffers = 4 resident buffers per path.
    per_row_bytes = 4 * (lanes_mel + lanes_mag) * itemsize

    budget = _vmem_budget_bytes(kind)
    tile_rows = max(8, (budget // per_row_bytes) // 8 * 8)
    tile_rows = min(tile_rows, 16384, _round_up(n_rows, 8))

    g = pl.cdiv(n_rows, tile_rows)
    if "v7" in kind and g > 1 and (g % 2) == 1:
        # Keep both v7x TensorCores evenly loaded on the "parallel" axis.
        tile_rows = max(8, _round_up(pl.cdiv(n_rows, g + 1), 8))
        g = pl.cdiv(n_rows, tile_rows)

    # VMEM limit derived from the actual tile footprint (+ output slack).
    vmem_limit = int(4 * tile_rows * (lanes_mel + lanes_mag) * itemsize
                     + 4 * 8 * (lanes_mel + lanes_mag) * 4
                     + (2 << 20))

    kernel = _make_partial_kernel(n_rows, tile_rows)

    mel_partials, mag_partials = pl.pallas_call(
        kernel,
        out_shape=(
            jax.ShapeDtypeStruct((g, 1, n_mels), jnp.float32),
            jax.ShapeDtypeStruct((g, 1, n_freq), jnp.float32),
        ),
        grid=(g,),
        in_specs=[
            pl.BlockSpec((tile_rows, n_mels), lambda i: (i, 0)),
            pl.BlockSpec((tile_rows, n_mels), lambda i: (i, 0)),
            pl.BlockSpec((tile_rows, n_freq), lambda i: (i, 0)),
            pl.BlockSpec((tile_rows, n_freq), lambda i: (i, 0)),
        ],
        out_specs=(
            pl.BlockSpec((1, 1, n_mels), lambda i: (i, 0, 0)),
            pl.BlockSpec((1, 1, n_freq), lambda i: (i, 0, 0)),
        ),
        compiler_params=pltpu.CompilerParams(
            dimension_semantics=("parallel",),   # each step owns its own row
            vmem_limit_bytes=vmem_limit,
        ),
    )(mels2, mels_hat2, mags2, mags_hat2)

    # ---- tiny finalize in plain JAX (two-level tree sum) ----
    mel_loss = jnp.sum(mel_partials) / float(n_rows * n_mels)
    mag_col = jnp.sum(mag_partials, axis=(0, 1))            # (n_freq,)
    mag_mean = jnp.sum(mag_col) / float(n_rows * n_freq)
    prio_mean = jnp.sum(mag_col[:n_priority_freq]) / float(n_rows * n_priority_freq)
    mag_loss = 0.5 * mag_mean + 0.5 * prio_mean
    return mel_loss, mag_loss


def tacotron_loss_ref(mels, mels_hat, mags, mags_hat,
                      n_priority_freq=N_PRIORITY_FREQ):
    mel_loss = jnp.mean(jnp.abs(mels - mels_hat))
    mag_abs = jnp.abs(mags - mags_hat)
    mag_loss = 0.5 * jnp.mean(mag_abs) + 0.5 * jnp.mean(
        mag_abs[:, :, :n_priority_freq])
    return mel_loss, mag_loss


if __name__ == "__main__":
    B, T = 2, 16
    key = jax.random.PRNGKey(0)
    k1, k2, k3, k4 = jax.random.split(key, 4)
    mels = jax.random.normal(k1, (B, T, N_MELS), dtype=jnp.float32)
    mels_hat = jax.random.normal(k2, (B, T, N_MELS), dtype=jnp.float32)
    mags = jax.random.normal(k3, (B, T, N_FREQ), dtype=jnp.float32)
    mags_hat = jax.random.normal(k4, (B, T, N_FREQ), dtype=jnp.float32)

    mel_loss, mag_loss = tacotron_loss(mels, mels_hat, mags, mags_hat)
    jax.block_until_ready((mel_loss, mag_loss))

    mel_ref, mag_ref = tacotron_loss_ref(mels, mels_hat, mags, mags_hat)
    assert jnp.allclose(mel_loss, mel_ref, rtol=1e-5, atol=1e-5), (mel_loss, mel_ref)
    assert jnp.allclose(mag_loss, mag_ref, rtol=1e-5, atol=1e-5), (mag_loss, mag_ref)

    print("KERNEL_OK")
</pallas_src>

<mosaic_0001>
module attributes {stable_mosaic.version = 11 : i64} {
  func.func @kernel(%arg0: i32, %arg1: memref<32x32xf32, #tpu.memory_space<vmem>>, %arg2: memref<32x32xf32, #tpu.memory_space<vmem>>, %arg3: memref<32x128xf32, #tpu.memory_space<vmem>>, %arg4: memref<32x128xf32, #tpu.memory_space<vmem>>, %arg5: memref<1x1x32xf32, #tpu.memory_space<vmem>>, %arg6: memref<1x1x128xf32, #tpu.memory_space<vmem>>) attributes {dimension_semantics = [#tpu.dimension_semantics<parallel>], iteration_bounds = array<i64: 1>, scalar_prefetch = 0 : i64, scratch_operands = 0 : i64, tpu.core_type = #tpu.core_type<tc>, window_params = [{transform_indices = @transform_0, window_bounds = array<i64: 32, 32>}, {transform_indices = @transform_1, window_bounds = array<i64: 32, 32>}, {transform_indices = @transform_2, window_bounds = array<i64: 32, 128>}, {transform_indices = @transform_3, window_bounds = array<i64: 32, 128>}, {transform_indices = @transform_4, window_bounds = array<i64: 1, 1, 32>}, {transform_indices = @transform_5, window_bounds = array<i64: 1, 1, 128>}]} {
    %c0 = arith.constant 0 : index
    %c0_0 = arith.constant 0 : index
    %0 = vector.load %arg1[%c0, %c0_0] : memref<32x32xf32, #tpu.memory_space<vmem>>, vector<32x32xf32>
    %c0_1 = arith.constant 0 : index
    %c0_2 = arith.constant 0 : index
    %1 = vector.load %arg2[%c0_1, %c0_2] : memref<32x32xf32, #tpu.memory_space<vmem>>, vector<32x32xf32>
    %2 = arith.subf %0, %1 : vector<32x32xf32>
    %3 = math.absf %2 : vector<32x32xf32>
    %c0_3 = arith.constant 0 : index
    %c0_4 = arith.constant 0 : index
    %4 = vector.load %arg3[%c0_3, %c0_4] : memref<32x128xf32, #tpu.memory_space<vmem>>, vector<32x128xf32>
    %c0_5 = arith.constant 0 : index
    %c0_6 = arith.constant 0 : index
    %5 = vector.load %arg4[%c0_5, %c0_6] : memref<32x128xf32, #tpu.memory_space<vmem>>, vector<32x128xf32>
    %6 = arith.subf %4, %5 : vector<32x128xf32>
    %7 = math.absf %6 : vector<32x128xf32>
    %cst = arith.constant dense<0.000000e+00> : vector<32xf32>
    %8 = vector.multi_reduction <add>, %3, %cst [0] : vector<32x32xf32> to vector<32xf32>
    %9 = vector.shape_cast %8 : vector<32xf32> to vector<1x32xf32>
    %c0_7 = arith.constant 0 : index
    %c0_8 = arith.constant 0 : index
    %c0_9 = arith.constant 0 : index
    %10 = vector.load %arg5[%c0_7, %c0_8, %c0_9] : memref<1x1x32xf32, #tpu.memory_space<vmem>>, vector<1x1x32xf32>
    %11 = vector.shape_cast %10 : vector<1x1x32xf32> to vector<1x32xf32>
    %12 = vector.shape_cast %9 : vector<1x32xf32> to vector<1x1x32xf32>
    tpu.vector_store %arg5[%c0_7, %c0_8, %c0_9], %12 {strides = array<i32>} : memref<1x1x32xf32, #tpu.memory_space<vmem>>, vector<1x1x32xf32>,
    %cst_10 = arith.constant dense<0.000000e+00> : vector<128xf32>
    %13 = vector.multi_reduction <add>, %7, %cst_10 [0] : vector<32x128xf32> to vector<128xf32>
    %14 = vector.shape_cast %13 : vector<128xf32> to vector<1x128xf32>
    %c0_11 = arith.constant 0 : index
    %c0_12 = arith.constant 0 : index
    %c0_13 = arith.constant 0 : index
    %15 = vector.load %arg6[%c0_11, %c0_12, %c0_13] : memref<1x1x128xf32, #tpu.memory_space<vmem>>, vector<1x1x128xf32>
    %16 = vector.shape_cast %15 : vector<1x1x128xf32> to vector<1x128xf32>
    %17 = vector.shape_cast %14 : vector<1x128xf32> to vector<1x1x128xf32>
    tpu.vector_store %arg6[%c0_11, %c0_12, %c0_13], %17 {strides = array<i32>} : memref<1x1x128xf32, #tpu.memory_space<vmem>>, vector<1x1x128xf32>,
    return
  }
  func.func @transform_0(%arg0: i32) -> (i32, i32) {
    %c0_i32 = arith.constant 0 : i32
    %c0_i32_0 = arith.constant 0 : i32
    return %arg0, %c0_i32 : i32, i32
  }
  func.func @transform_1(%arg0: i32) -> (i32, i32) {
    %c0_i32 = arith.constant 0 : i32
    %c0_i32_0 = arith.constant 0 : i32
    return %arg0, %c0_i32 : i32, i32
  }
  func.func @transform_2(%arg0: i32) -> (i32, i32) {
    %c0_i32 = arith.constant 0 : i32
    %c0_i32_0 = arith.constant 0 : i32
    return %arg0, %c0_i32 : i32, i32
  }
  func.func @transform_3(%arg0: i32) -> (i32, i32) {
    %c0_i32 = arith.constant 0 : i32
    %c0_i32_0 = arith.constant 0 : i32
    return %arg0, %c0_i32 : i32, i32
  }
  func.func @transform_4(%arg0: i32) -> (i32, i32, i32) {
    %c0_i32 = arith.constant 0 : i32
    %c0_i32_0 = arith.constant 0 : i32
    %c0_i32_1 = arith.constant 0 : i32
    return %arg0, %c0_i32, %c0_i32_0 : i32, i32, i32
  }
  func.func @transform_5(%arg0: i32) -> (i32, i32, i32) {
    %c0_i32 = arith.constant 0 : i32
    %c0_i32_0 = arith.constant 0 : i32
    %c0_i32_1 = arith.constant 0 : i32
    return %arg0, %c0_i32, %c0_i32_0 : i32, i32, i32
  }
}

</mosaic_0001>

<llo_original>
// kernel: tpu_custom_call.1
$region0: #{tpu_custom_call.1}
  #allocation0 [shape = 'u32[]', space=smem, size = 0x4, offset = 0x4, fixed_abs, tag = 'smem constant byte address 0x4 - core index']
  #allocation1 [shape = 'u32[144,128]{1,0:T(1,128)}', space=vmem, size = 0x12000, scoped, tag = 'internal scratch']
  %s0 = inlined_call_operand.hbm [shape: f32[32,32], index: 0, kind: input, shape index: {}]
  %s1 = inlined_call_operand.hbm [shape: f32[32,32], index: 1, kind: input, shape index: {}]
  %s2 = inlined_call_operand.hbm [shape: f32[32,128], index: 2, kind: input, shape index: {}]
  %s3 = inlined_call_operand.hbm [shape: f32[32,128], index: 3, kind: input, shape index: {}]
  %s4 = inlined_call_operand.hbm [shape: f32[1,1,32], index: 4, kind: output, shape index: {0}]
  %s5 = inlined_call_operand.hbm [shape: f32[1,1,128], index: 5, kind: output, shape index: {1}]
  %6 = xla_tuple %s4, %s5
  %s7 = sld [smem:[#allocation0]]
  $region50: #{tpu_custom_call.1} parent=0
    _
  %s9 = ssub.s32 1, %s7
  %s10 = scalar_select 0, %s9, %s7
  $region1: #{tpu_custom_call.1} parent=0
    #allocation2 [shape = 'u8[16384]{0}', space=vmem, size = 0x4000, scoped, tag = 'input window, operand 0, single buffered']
    #allocation3 [shape = 's32[1]{0}', space=sflag, size = 0x4, scoped, tag = 'scoped memory for tpu_custom_call.1']
    #allocation4 [shape = 's32[1]{0}', space=sflag, size = 0x4, scoped, tag = 'scoped memory for tpu_custom_call.1']
    #allocation5 [shape = 'u8[16384]{0}', space=vmem, size = 0x4000, scoped, tag = 'input window, operand 1, single buffered']
    #allocation6 [shape = 's32[1]{0}', space=sflag, size = 0x4, scoped, tag = 'scoped memory for tpu_custom_call.1']
    #allocation7 [shape = 'u8[16384]{0}', space=vmem, size = 0x4000, scoped, tag = 'input window, operand 2, single buffered']
    #allocation8 [shape = 'u8[16384]{0}', space=vmem, size = 0x4000, scoped, tag = 'input window, operand 3, single buffered']
    #allocation9 [shape = 's32[1]{0}', space=sflag, size = 0x4, scoped, tag = 'scoped memory for tpu_custom_call.1']
    #allocation10 [shape = 'u8[512]{0}', space=vmem, size = 0x400, scoped, tag = 'output window, operand 0, single buffered']
    #allocation11 [shape = 'u8[512]{0}', space=vmem, size = 0x400, scoped, tag = 'output window, operand 1, single buffered']
    #allocation12 [shape = 's32[1]{0}', space=sflag, size = 0x4, scoped, tag = 'scoped memory for tpu_custom_call.1']
    %11 = vsyncpa [#allocation3], 0
    %12 = vsyncpa [#allocation6], 0
    %13 = vsyncpa [#allocation9], 0
    %14 = vsyncpa [#allocation4], 0
    %15 = vsyncpa [#allocation12], 0
    // Predicated region
    $region2: #{tpu_custom_call.1} parent=1 // pred_check
      _
    $region3: #{tpu_custom_call.1} parent=1 // pred_check_branch
      %17 = sbr.rel (0) target = $region5
    $region4: #{tpu_custom_call.1} parent=1 // pred_region
      %s19 = ssub.s32 512, 512
      %20 = vsyncadd [#allocation3], %s19
      %s21 = sshll.u32 [#allocation2], 4
      %s22 = int_to_ptr.vmem [resolvable:$true] %s21
      %27 = dma.hbm_to_vmem [thread:$0]  %s0, 512, %s22, [#allocation3], 128, 128, 8
    $region5: #{tpu_custom_call.1} parent=1 // pred_fallthru
      _
    // Predicated region
    $region6: #{tpu_custom_call.1} parent=1 // pred_check
      _
    $region7: #{tpu_custom_call.1} parent=1 // pred_check_branch
      %29 = sbr.rel (0) target = $region9
    $region8: #{tpu_custom_call.1} parent=1 // pred_region
      %s31 = ssub.s32 512, 512
      %32 = vsyncadd [#allocation6], %s31
      %s33 = sshll.u32 [#allocation5], 4
      %s34 = int_to_ptr.vmem [resolvable:$true] %s33
      %39 = dma.hbm_to_vmem [thread:$0]  %s1, 512, %s34, [#allocation6], 128, 128, 8
    $region9: #{tpu_custom_call.1} parent=1 // pred_fallthru
      _
    // Predicated region
    $region10: #{tpu_custom_call.1} parent=1 // pred_check
      _
    $region11: #{tpu_custom_call.1} parent=1 // pred_check_branch
      %41 = sbr.rel (0) target = $region13
    $region12: #{tpu_custom_call.1} parent=1 // pred_region
      %s43 = ssub.s32 512, 512
      %44 = vsyncadd [#allocation6], %s43
      %s45 = sshll.u32 [#allocation7], 4
      %s46 = int_to_ptr.vmem [resolvable:$true] %s45
      %51 = dma.hbm_to_vmem [thread:$0]  %s2, 512, %s46, [#allocation6], 128, 128, 8
    $region13: #{tpu_custom_call.1} parent=1 // pred_fallthru
      _
    // Predicated region
    $region14: #{tpu_custom_call.1} parent=1 // pred_check
      _
    $region15: #{tpu_custom_call.1} parent=1 // pred_check_branch
      %53 = sbr.rel (0) target = $region17
    $region16: #{tpu_custom_call.1} parent=1 // pred_region
      %s55 = ssub.s32 512, 512
      %56 = vsyncadd [#allocation9], %s55
      %s57 = sshll.u32 [#allocation8], 4
      %s58 = int_to_ptr.vmem [resolvable:$true] %s57
      %63 = dma.hbm_to_vmem [thread:$0]  %s3, 512, %s58, [#allocation9], 128, 128, 8
    $region17: #{tpu_custom_call.1} parent=1 // pred_fallthru
      _
    // Predicated region
    $region18: #{tpu_custom_call.1} parent=1 // pred_check
      _
    $region19: #{tpu_custom_call.1} parent=1 // pred_check_branch
      %65 = sbr.rel (0) target = $region21
    $region20: #{tpu_custom_call.1} parent=1 // pred_region
      %66 = dma.done [#allocation3], 512
    $region21: #{tpu_custom_call.1} parent=1 // pred_fallthru
      _
    // Predicated region
    $region22: #{tpu_custom_call.1} parent=1 // pred_check
      _
    $region23: #{tpu_custom_call.1} parent=1 // pred_check_branch
      %68 = sbr.rel (0) target = $region25
    $region24: #{tpu_custom_call.1} parent=1 // pred_region
      %69 = dma.done [#allocation6], 512
    $region25: #{tpu_custom_call.1} parent=1 // pred_fallthru
      _
    // Predicated region
    $region26: #{tpu_custom_call.1} parent=1 // pred_check
      _
    $region27: #{tpu_custom_call.1} parent=1 // pred_check_branch
      %71 = sbr.rel (0) target = $region29
    $region28: #{tpu_custom_call.1} parent=1 // pred_region
      %72 = dma.done [#allocation6], 512
    $region29: #{tpu_custom_call.1} parent=1 // pred_fallthru
      _
    // Predicated region
    $region30: #{tpu_custom_call.1} parent=1 // pred_check
      _
    $region31: #{tpu_custom_call.1} parent=1 // pred_check_branch
      %74 = sbr.rel (0) target = $region33
    $region32: #{tpu_custom_call.1} parent=1 // pred_region
      %75 = dma.done [#allocation9], 512
    $region33: #{tpu_custom_call.1} parent=1 // pred_fallthru
      _
    %v76 = vld [vmem:[#allocation2] sm:$0xff]
    %v77 = vld [vmem:[#allocation2 + $0x8] sm:$0xff]
    %v78 = vld [vmem:[#allocation2 + $0x10] sm:$0xff]
    %v79 = vld [vmem:[#allocation2 + $0x18] sm:$0xff]
    %v80 = vld [vmem:[#allocation5] sm:$0xff]
    %v81 = vld [vmem:[#allocation5 + $0x8] sm:$0xff]
    %v82 = vld [vmem:[#allocation5 + $0x10] sm:$0xff]
    %v83 = vld [vmem:[#allocation5 + $0x18] sm:$0xff]
    %v84 = vsub.f32 %v76, %v80
    %v85 = vsub.f32 %v77, %v81
    %v86 = vsub.f32 %v78, %v82
    %v87 = vsub.f32 %v79, %v83
    %v88 = vand.u32 2147483647, %v84
    %v89 = vand.u32 2147483647, %v85
    %v90 = vand.u32 2147483647, %v86
    %v91 = vand.u32 2147483647, %v87
    %v92 = vld [vmem:[#allocation7] sm:$0xff]
    %v93 = vld [vmem:[#allocation7 + $0x8] sm:$0xff]
    %v94 = vld [vmem:[#allocation7 + $0x10] sm:$0xff]
    %v95 = vld [vmem:[#allocation7 + $0x18] sm:$0xff]
    %v96 = vld [vmem:[#allocation8] sm:$0xff]
    %v97 = vld [vmem:[#allocation8 + $0x8] sm:$0xff]
    %v98 = vld [vmem:[#allocation8 + $0x10] sm:$0xff]
    %v99 = vld [vmem:[#allocation8 + $0x18] sm:$0xff]
    %v100 = vsub.f32 %v92, %v96
    %v101 = vsub.f32 %v93, %v97
    %v102 = vsub.f32 %v94, %v98
    %v103 = vsub.f32 %v95, %v99
    %v104 = vand.u32 2147483647, %v100
    %v105 = vand.u32 2147483647, %v101
    %v106 = vand.u32 2147483647, %v102
    %v107 = vand.u32 2147483647, %v103
    %vm108 = vcmask 261120
    %v109 = vsel %vm108, %v88, 0.0
    %v110 = vsel %vm108, %v89, 0.0
    %v111 = vadd.f32 %v109, %v110
    %v112 = vsel %vm108, %v90, 0.0
    %v113 = vadd.f32 %v111, %v112
    %v114 = vsel %vm108, %v91, 0.0
    %v115 = vadd.f32 %v113, %v114
    %v116 = vrot.slane %v115, 4
    %v117 = vadd.f32 %v115, %v116
    %v118 = vrot.slane %v117, 2
    %v119 = vadd.f32 %v117, %v118
    %v120 = vrot.slane %v119, 1
    %v121 = vadd.f32 %v119, %v120
    %vm122 = vcmask 253952
    %123 = vst.msk [vmem:[#allocation10] sm:$0x1] %vm122, %v121
    %v124 = vadd.f32 %v104, %v105
    %v125 = vadd.f32 %v124, %v106
    %v126 = vadd.f32 %v125, %v107
    %v127 = vrot.slane %v126, 4
    %v128 = vadd.f32 %v126, %v127
    %v129 = vrot.slane %v128, 2
    %v130 = vadd.f32 %v128, %v129
    %v131 = vrot.slane %v130, 1
    %v132 = vadd.f32 %v130, %v131
    %133 = vst [vmem:[#allocation11] sm:$0x1] %v132
    // Predicated region
    $region34: #{tpu_custom_call.1} parent=1 // pred_check
      _
    $region35: #{tpu_custom_call.1} parent=1 // pred_check_branch
      %135 = sbr.rel (0) target = $region37
    $region36: #{tpu_custom_call.1} parent=1 // pred_region
      %s137 = ssub.s32 16, 16
      %138 = vsyncadd [#allocation4], %s137
      %s140 = sshll.u32 [#allocation10], 4
      %s141 = int_to_ptr.vmem [resolvable:$true] %s140
      %143 = dma.vmem_to_hbm [thread:$0]  %s141, 16, %s4, [#allocation4]
    $region37: #{tpu_custom_call.1} parent=1 // pred_fallthru
      _
    // Predicated region
    $region38: #{tpu_custom_call.1} parent=1 // pred_check
      _
    $region39: #{tpu_custom_call.1} parent=1 // pred_check_branch
      %145 = sbr.rel (0) target = $region41
    $region40: #{tpu_custom_call.1} parent=1 // pred_region
      %s147 = ssub.s32 16, 16
      %148 = vsyncadd [#allocation12], %s147
      %s150 = sshll.u32 [#allocation11], 4
      %s151 = int_to_ptr.vmem [resolvable:$true] %s150
      %153 = dma.vmem_to_hbm [thread:$0]  %s151, 16, %s5, [#allocation12]
    $region41: #{tpu_custom_call.1} parent=1 // pred_fallthru
      _
    // Predicated region
    $region42: #{tpu_custom_call.1} parent=1 // pred_check
      _
    $region43: #{tpu_custom_call.1} parent=1 // pred_check_branch
      %155 = sbr.rel (0) target = $region45
    $region44: #{tpu_custom_call.1} parent=1 // pred_region
      %156 = dma.done [#allocation4], 16
    $region45: #{tpu_custom_call.1} parent=1 // pred_fallthru
      _
    // Predicated region
    $region46: #{tpu_custom_call.1} parent=1 // pred_check
      _
    $region47: #{tpu_custom_call.1} parent=1 // pred_check_branch
      %158 = sbr.rel (0) target = $region49
    $region48: #{tpu_custom_call.1} parent=1 // pred_region
      %159 = dma.done [#allocation12], 16
    $region49: #{tpu_custom_call.1} parent=1 // pred_fallthru
      _
    %160 = vsyncpa [#allocation3], 1
    %161 = vsyncpa [#allocation6], 1
    %162 = vsyncpa [#allocation9], 1
    %163 = vsyncpa [#allocation4], 1
    %164 = vsyncpa [#allocation12], 1

</llo_original>
